<compile_context>
chip_gen: v7x
topology: tpu7x:2x2x1
jax: 0.10.0
libtpu: 0.0.40
codegen_flags: <defaults>
</compile_context>

<pallas_src>
import functools

import jax
import jax.numpy as jnp
from jax.experimental import pallas as pl
from jax.experimental.pallas import tpu as pltpu

_ALPHA = 3.13482                       # (sigmoid(x) - 0.5) * 2 * a == a * tanh(x / 2)
_LANE = 128
_SUBLANE_ALIGN = 32                    # safe sublane multiple for f32/bf16/int8 blocks
_DEFAULT_BLOCK_BYTES = 4 * 1024 * 1024 # ~4 MiB per buffer (HBM-roofline sweet spot)
_MAX_BLOCK_BYTES = 8 * 1024 * 1024     # hard cap: 4 buffers <= 32 MiB + slack < v7x 64 MiB
_SPLIT_ROWS = 2048                     # slabs >= 1 MiB (f32): force >= 2 grid steps (v7x megacore)
_RAGGED_MAX_BLOCK_ROWS = 1024          # (1, C) buffers get sublane-padded 8x; keep them modest


def _round_up(a, b):
    return ((a + b - 1) // b) * b


def _act_fun_kernel(x_ref, o_ref, *, compute_dtype):
    x = x_ref[...].astype(compute_dtype)
    o_ref[...] = (_ALPHA * jnp.tanh(0.5 * x)).astype(o_ref.dtype)


def _compute_dtype_for(dtype):
    """bf16-native compute on chips with bf16 VPU/EUP (v6e/v7x); f32 otherwise."""
    if dtype == jnp.bfloat16:
        kind = jax.devices()[0].device_kind.lower()
        if ("v2" not in kind and "v3" not in kind and "v4" not in kind
                and "v5" not in kind):
            return jnp.bfloat16
    return jnp.float32


def _compiler_params(block_bytes):
    # in + out, double-buffered each -> 4x block, plus scratch margin.
    vmem_limit = int(min(48 << 20, max(16 << 20, 4 * block_bytes + (4 << 20))))
    return pltpu.CompilerParams(
        dimension_semantics=("parallel",),
        vmem_limit_bytes=vmem_limit,
    )


def act_fun(x, *, tile_rows=None):
    """Elementwise (sigmoid(x) - 0.5) * 2 * 3.13482 via a Pallas TPU kernel."""
    orig_shape = x.shape
    dtype = x.dtype
    n = x.size
    if n == 0:
        return x

    itemsize = jnp.dtype(dtype).itemsize
    kernel = functools.partial(_act_fun_kernel,
                               compute_dtype=_compute_dtype_for(dtype))
    cost = pl.CostEstimate(flops=2 * n, transcendentals=n,
                           bytes_accessed=2 * n * itemsize)

    if tile_rows is None:
        tile_rows = _DEFAULT_BLOCK_BYTES // (_LANE * itemsize)   # 8192 f32, 16384 bf16
    tile_rows = max(1, min(tile_rows, _MAX_BLOCK_BYTES // (_LANE * itemsize)))

    if n % _LANE == 0:
        # ---- Aligned fast path: free reshape to a lane-dense (rows, 128) slab.
        rows = n // _LANE
        x2d = x.reshape(rows, _LANE)

        block_rows = min(tile_rows, rows)
        # Keep >= 2 grid steps for large slabs so "parallel" shards across both
        # TensorCores on v7x instead of serializing on one.
        if block_rows == rows and rows >= _SPLIT_ROWS:
            block_rows = pl.cdiv(rows, 2)
        if block_rows < rows:
            # Non-full blocks must be sublane-aligned.
            block_rows = min(rows, max(_SUBLANE_ALIGN,
                                       _round_up(block_rows, _SUBLANE_ALIGN)))
        grid = (pl.cdiv(rows, block_rows),)
        block_bytes = block_rows * _LANE * itemsize

        out2d = pl.pallas_call(
            kernel,
            out_shape=jax.ShapeDtypeStruct((rows, _LANE), dtype),
            grid_spec=pltpu.PrefetchScalarGridSpec(
                num_scalar_prefetch=0,
                grid=grid,
                in_specs=[pl.BlockSpec((block_rows, _LANE), lambda i: (i, 0))],
                out_specs=pl.BlockSpec((block_rows, _LANE), lambda i: (i, 0)),
            ),
            compiler_params=_compiler_params(block_bytes),
            cost_estimate=cost,
        )(x2d)
        return out2d.reshape(orig_shape)

    # ---- Ragged fallback (n % 128 != 0): run on a free (1, n) view.
    # No jnp.pad and no trailing slice, so HBM traffic stays at the minimal
    # 1 read + 1 write; the partial trailing block is handled by Pallas
    # (tanh is bounded, OOB stores are dropped).
    x2d = x.reshape(1, n)
    max_cols = min(tile_rows, _RAGGED_MAX_BLOCK_ROWS) * _LANE
    if n <= max_cols:
        block_cols = n                 # single full-extent block (full-dim escape)
    else:
        block_cols = max_cols          # multiple of 128; last block is partial
    grid = (pl.cdiv(n, block_cols),)
    # (1, C) VMEM buffers are sublane-padded to 8 rows -> budget 8x the bytes.
    block_bytes = 8 * block_cols * itemsize

    out2d = pl.pallas_call(
        kernel,
        out_shape=jax.ShapeDtypeStruct((1, n), dtype),
        grid_spec=pltpu.PrefetchScalarGridSpec(
            num_scalar_prefetch=0,
            grid=grid,
            in_specs=[pl.BlockSpec((1, block_cols), lambda i: (0, i))],
            out_specs=pl.BlockSpec((1, block_cols), lambda i: (0, i)),
        ),
        compiler_params=_compiler_params(block_bytes),
        cost_estimate=cost,
    )(x2d)
    return out2d.reshape(orig_shape)


def _ref(x):
    x32 = x.astype(jnp.float32)
    return (jax.nn.sigmoid(x32) - 0.5) * 2.0 * 3.13482


if __name__ == "__main__":
    key = jax.random.PRNGKey(0)
    k1, k2, k3, k4 = jax.random.split(key, 4)

    # 1) Module-typical NCHW activation (aligned fast path, single block).
    x = jax.random.normal(k1, (2, 4, 16, 16), dtype=jnp.float32)
    out = jax.block_until_ready(act_fun(x))
    assert out.shape == x.shape and out.dtype == x.dtype
    assert jnp.max(jnp.abs(out - _ref(x))) < 1e-5

    # 2) Larger aligned slab -> multi-block grid (>= 2 steps, megacore path).
    x = jax.random.normal(k2, (4096, 128), dtype=jnp.float32)
    out = jax.block_until_ready(act_fun(x))
    assert jnp.max(jnp.abs(out - _ref(x))) < 1e-5

    # 3) Ragged numel (not a multiple of 128): single full-extent block, no pad.
    x = jax.random.normal(k3, (3, 5, 7), dtype=jnp.float32)
    out = jax.block_until_ready(act_fun(x))
    assert out.shape == x.shape
    assert jnp.max(jnp.abs(out - _ref(x))) < 1e-5

    # 4) Ragged + tiny tile: exercises the partial trailing block path.
    x = jax.random.normal(k4, (2, 150), dtype=jnp.float32)
    out = jax.block_until_ready(act_fun(x, tile_rows=1))
    assert jnp.max(jnp.abs(out - _ref(x))) < 1e-5

    # 5) bf16 input: native bf16 compute on v6e/v7x, f32 upcast on older chips.
    xb = jax.random.normal(k1, (2, 4, 16, 16), dtype=jnp.bfloat16)
    outb = jax.block_until_ready(act_fun(xb))
    assert outb.shape == xb.shape and outb.dtype == jnp.bfloat16
    assert jnp.max(jnp.abs(outb.astype(jnp.float32) - _ref(xb))) < 5e-2

    print("KERNEL_OK")
</pallas_src>

<mosaic_0001>
module attributes {stable_mosaic.version = 11 : i64} {
  func.func @_act_fun_kernel(%arg0: i32, %arg1: memref<16x128xf32, #tpu.memory_space<vmem>>, %arg2: memref<16x128xf32, #tpu.memory_space<vmem>>) attributes {dimension_semantics = [#tpu.dimension_semantics<parallel>], iteration_bounds = array<i64: 1>, scalar_prefetch = 0 : i64, scratch_operands = 0 : i64, tpu.core_type = #tpu.core_type<tc>, window_params = [{transform_indices = @transform_0, window_bounds = array<i64: 16, 128>}, {transform_indices = @transform_1, window_bounds = array<i64: 16, 128>}]} {
    %c0 = arith.constant 0 : index
    %c0_0 = arith.constant 0 : index
    %0 = vector.load %arg1[%c0, %c0_0] : memref<16x128xf32, #tpu.memory_space<vmem>>, vector<16x128xf32>
    %cst = arith.constant 5.000000e-01 : f32
    %1 = vector.broadcast %cst : f32 to vector<16x128xf32>
    %2 = arith.mulf %1, %0 : vector<16x128xf32>
    %3 = math.tanh %2 : vector<16x128xf32>
    %cst_1 = arith.constant 3.134820e+00 : f32
    %4 = vector.broadcast %cst_1 : f32 to vector<16x128xf32>
    %5 = arith.mulf %4, %3 : vector<16x128xf32>
    %c0_2 = arith.constant 0 : index
    %c0_3 = arith.constant 0 : index
    %6 = vector.load %arg2[%c0_2, %c0_3] : memref<16x128xf32, #tpu.memory_space<vmem>>, vector<16x128xf32>
    tpu.vector_store %arg2[%c0_2, %c0_3], %5 {strides = array<i32>} : memref<16x128xf32, #tpu.memory_space<vmem>>, vector<16x128xf32>,
    return
  }
  func.func @transform_0(%arg0: i32) -> (i32, i32) {
    %c0_i32 = arith.constant 0 : i32
    %c0_i32_0 = arith.constant 0 : i32
    return %arg0, %c0_i32 : i32, i32
  }
  func.func @transform_1(%arg0: i32) -> (i32, i32) {
    %c0_i32 = arith.constant 0 : i32
    %c0_i32_0 = arith.constant 0 : i32
    return %arg0, %c0_i32 : i32, i32
  }
}

</mosaic_0001>

<llo_original>
// kernel: tpu_custom_call.1
$region0: #{tpu_custom_call.1}
  #allocation0 [shape = 'u32[]', space=smem, size = 0x4, offset = 0x4, fixed_abs, tag = 'smem constant byte address 0x4 - core index']
  #allocation1 [shape = 'u32[144,128]{1,0:T(1,128)}', space=vmem, size = 0x12000, scoped, tag = 'internal scratch']
  %s0 = inlined_call_operand.hbm [shape: f32[16,128], index: 0, kind: input, shape index: {}]
  %s1 = inlined_call_operand.hbm [shape: f32[16,128], index: 1, kind: output, shape index: {}]
  %s2 = sld [smem:[#allocation0]]
  $region18: #{tpu_custom_call.1} parent=0
    _
  %s4 = ssub.s32 1, %s2
  %s5 = scalar_select 0, %s4, %s2
  $region1: #{tpu_custom_call.1} parent=0
    #allocation2 [shape = 'u8[8192]{0}', space=vmem, size = 0x2000, scoped, tag = 'input window, operand 0, single buffered']
    #allocation3 [shape = 's32[1]{0}', space=sflag, size = 0x4, scoped, tag = 'scoped memory for tpu_custom_call.1']
    #allocation4 [shape = 's32[1]{0}', space=sflag, size = 0x4, scoped, tag = 'scoped memory for tpu_custom_call.1']
    #allocation5 [shape = 'u8[8192]{0}', space=vmem, size = 0x2000, scoped, tag = 'output window, operand 0, single buffered']
    %6 = vsyncpa [#allocation3], 0
    %7 = vsyncpa [#allocation4], 0
    // Predicated region
    $region2: #{tpu_custom_call.1} parent=1 // pred_check
      _
    $region3: #{tpu_custom_call.1} parent=1 // pred_check_branch
      %9 = sbr.rel (0) target = $region5
    $region4: #{tpu_custom_call.1} parent=1 // pred_region
      %s11 = ssub.s32 256, 256
      %12 = vsyncadd [#allocation3], %s11
      %s13 = sshll.u32 [#allocation2], 4
      %s14 = int_to_ptr.vmem [resolvable:$true] %s13
      %19 = dma.hbm_to_vmem [thread:$0]  %s0, 256, %s14, [#allocation3], 128, 128, 8
    $region5: #{tpu_custom_call.1} parent=1 // pred_fallthru
      _
    // Predicated region
    $region6: #{tpu_custom_call.1} parent=1 // pred_check
      _
    $region7: #{tpu_custom_call.1} parent=1 // pred_check_branch
      %21 = sbr.rel (0) target = $region9
    $region8: #{tpu_custom_call.1} parent=1 // pred_region
      %22 = dma.done [#allocation3], 256
    $region9: #{tpu_custom_call.1} parent=1 // pred_fallthru
      _
    %v23 = vld [vmem:[#allocation2] sm:$0xff]
    %v24 = vld [vmem:[#allocation2 + $0x8] sm:$0xff]
    %v25 = vmul.f32 %v23, 0.5
    %v26 = vmul.f32 %v24, 0.5
    %v27 = vtanh.pop %v25
    %v28 = vtanh.pop %v26
    %v29 = vmul.f32 %v27, 3.13482
    %v30 = vmul.f32 %v28, 3.13482
    %31 = vst [vmem:[#allocation5] sm:$0xff] %v29
    %32 = vst [vmem:[#allocation5 + $0x8] sm:$0xff] %v30
    // Predicated region
    $region10: #{tpu_custom_call.1} parent=1 // pred_check
      _
    $region11: #{tpu_custom_call.1} parent=1 // pred_check_branch
      %34 = sbr.rel (0) target = $region13
    $region12: #{tpu_custom_call.1} parent=1 // pred_region
      %s36 = ssub.s32 256, 256
      %37 = vsyncadd [#allocation4], %s36
      %s38 = sshll.u32 [#allocation5], 4
      %s39 = int_to_ptr.vmem [resolvable:$true] %s38
      %44 = dma.vmem_to_hbm [thread:$0]  %s39, 256, %s1, [#allocation4], 128, 128, 8
    $region13: #{tpu_custom_call.1} parent=1 // pred_fallthru
      _
    // Predicated region
    $region14: #{tpu_custom_call.1} parent=1 // pred_check
      _
    $region15: #{tpu_custom_call.1} parent=1 // pred_check_branch
      %46 = sbr.rel (0) target = $region17
    $region16: #{tpu_custom_call.1} parent=1 // pred_region
      %47 = dma.done [#allocation4], 256
    $region17: #{tpu_custom_call.1} parent=1 // pred_fallthru
      _
    %48 = vsyncpa [#allocation3], 1
    %49 = vsyncpa [#allocation4], 1

</llo_original>
